<compile_context>
chip_gen: v6e
topology: v6e:2x2x1
jax: 0.10.0
libtpu: 0.0.40
codegen_flags: <defaults>
</compile_context>

<pallas_src>
import functools

import jax
import jax.numpy as jnp
from jax.experimental import pallas as pl
from jax.experimental.pallas import tpu as pltpu


# ------------------------------ tiling helpers -----------------------------

def _pick_tile(dim, cands=(512, 256, 128)):
    """Largest MXU-friendly tile that divides `dim`, else the full dim."""
    for c in cands:
        if dim % c == 0:
            return c
    return dim


def _pick_q_tile(L):
    """q-block size: largest 128/256/512 divisor whose score tiles fit VMEM."""
    cands = [tq for tq in (512, 256, 128) if L % tq == 0]
    for tq in cands:
        # bias-in + attn-out score tiles, double buffered, f32
        if 4 * tq * L * 4 <= (24 << 20):
            return tq
    return cands[-1] if cands else L


# --------------------------- tiled matmul (+bias) ---------------------------

def _matmul_kernel(x_ref, w_ref, *rest, has_bias):
    if has_bias:
        b_ref, o_ref, acc_ref = rest
    else:
        b_ref = None
        o_ref, acc_ref = rest

    @pl.when(pl.program_id(2) == 0)
    def _init():
        acc_ref[...] = jnp.zeros_like(acc_ref)

    acc_ref[...] += jnp.dot(x_ref[...], w_ref[...],
                            preferred_element_type=jnp.float32)

    @pl.when(pl.program_id(2) == pl.num_programs(2) - 1)
    def _finalize():
        r = acc_ref[...]
        if has_bias:
            r = r + b_ref[...].astype(jnp.float32)
        o_ref[...] = r.astype(o_ref.dtype)


def linear_pallas(x2d, w, b=None):
    """(M,K) @ (K,N) [+ b] with a tiled grid and f32 accumulator scratch."""
    M, K = x2d.shape
    K2, N = w.shape
    assert K == K2
    tm = _pick_tile(M)
    tn = _pick_tile(N)
    tk = _pick_tile(K)
    grid = (M // tm, N // tn, K // tk)
    has_bias = b is not None

    in_specs = [
        pl.BlockSpec((tm, tk), lambda i, j, k: (i, k)),
        pl.BlockSpec((tk, tn), lambda i, j, k: (k, j)),
    ]
    args = [x2d, w]
    if has_bias:
        in_specs.append(pl.BlockSpec((1, tn), lambda i, j, k: (0, j)))
        args.append(b.reshape(1, N))

    per_step = (tm * tk + tk * tn + tm * tn + (tn if has_bias else 0)) * 4
    vmem_limit = int(min(max(4 * per_step + (8 << 20), 32 << 20), 64 << 20))

    kern = functools.partial(_matmul_kernel, has_bias=has_bias)
    return pl.pallas_call(
        kern,
        out_shape=jax.ShapeDtypeStruct((M, N), x2d.dtype),
        grid=grid,
        in_specs=in_specs,
        out_specs=pl.BlockSpec((tm, tn), lambda i, j, k: (i, j)),
        scratch_shapes=[pltpu.VMEM((tm, tn), jnp.float32)],
        compiler_params=pltpu.CompilerParams(
            dimension_semantics=("parallel", "parallel", "arbitrary"),
            vmem_limit_bytes=vmem_limit),
        cost_estimate=pl.CostEstimate(
            flops=2 * M * N * K,
            transcendentals=0,
            bytes_accessed=4 * (M * K + K * N + M * N + (N if has_bias else 0))),
    )(*args)


# --------------------------- fused attention core ---------------------------

def _attn_core_kernel(q_ref, k_ref, v_ref, *rest, scale, has_bias, has_mask):
    idx = 0
    bias_ref = None
    mask_ref = None
    if has_bias:
        bias_ref = rest[idx]; idx += 1
    if has_mask:
        mask_ref = rest[idx]; idx += 1
    y_ref = rest[idx]
    a_ref = rest[idx + 1]

    # bf16 MXU operands, f32 accumulation; scale folded into q (TQ x Dh only).
    q = (q_ref[0, 0].astype(jnp.float32) * scale).astype(jnp.bfloat16)  # (TQ, Dh)
    k = k_ref[0, 0].astype(jnp.bfloat16)                                # (L, Dh)
    v = v_ref[0, 0].astype(jnp.bfloat16)                                # (L, Dh)

    s = jnp.einsum('qc,kc->qk', q, k,
                   preferred_element_type=jnp.float32)                  # (TQ, L)
    if has_bias:
        s = s + bias_ref[0, 0].astype(jnp.float32)
    if has_mask:
        # additive mask (0 for valid keys, -1e30 for padding) fused into the add
        s = s + mask_ref[0]                                             # (1, L)

    s_max = jnp.max(s, axis=-1, keepdims=True)
    p = jnp.exp(s - s_max)
    denom = jnp.sum(p, axis=-1, keepdims=True)
    a = p * pl.reciprocal(denom, approx=True)                           # softmax

    y = jnp.dot(a.astype(jnp.bfloat16), v,
                preferred_element_type=jnp.float32)                     # (TQ, Dh)
    y_ref[0, 0] = y.astype(y_ref.dtype)
    a_ref[0, 0] = a.astype(a_ref.dtype)


def attention_core(q, k, v, bias_t, mask_add, scale):
    """q/k/v: (B,H,L,Dh); bias_t: (B,H,L,L) or None; mask_add: (B,1,L) or None."""
    B, H, L, Dh = q.shape
    TQ = _pick_q_tile(L)
    nq = L // TQ
    has_bias = bias_t is not None
    has_mask = mask_add is not None

    in_specs = [
        pl.BlockSpec((1, 1, TQ, Dh), lambda b, h, qi: (b, h, qi, 0)),
        pl.BlockSpec((1, 1, L, Dh), lambda b, h, qi: (b, h, 0, 0)),
        pl.BlockSpec((1, 1, L, Dh), lambda b, h, qi: (b, h, 0, 0)),
    ]
    args = [q, k, v]
    if has_bias:
        in_specs.append(pl.BlockSpec((1, 1, TQ, L), lambda b, h, qi: (b, h, qi, 0)))
        args.append(bias_t)
    if has_mask:
        in_specs.append(pl.BlockSpec((1, 1, L), lambda b, h, qi: (b, 0, 0)))
        args.append(mask_add)

    out_specs = (
        pl.BlockSpec((1, 1, TQ, Dh), lambda b, h, qi: (b, h, qi, 0)),
        pl.BlockSpec((1, 1, TQ, L), lambda b, h, qi: (b, h, qi, 0)),
    )
    out_shape = (jax.ShapeDtypeStruct((B, H, L, Dh), jnp.float32),
                 jax.ShapeDtypeStruct((B, H, L, L), jnp.float32))

    per_step = (TQ * Dh + 2 * L * Dh + (TQ * L if has_bias else 0)
                + (L if has_mask else 0) + TQ * Dh + TQ * L) * 4
    vmem_limit = int(min(max(4 * per_step + (8 << 20), 32 << 20), 64 << 20))

    flops = 4 * B * H * L * L * Dh + 6 * B * H * L * L
    bytes_accessed = 4 * (4 * B * H * L * Dh
                          + (B * H * L * L if has_bias else 0)
                          + (B * L if has_mask else 0)
                          + B * H * L * L)

    kern = functools.partial(_attn_core_kernel, scale=scale,
                             has_bias=has_bias, has_mask=has_mask)
    return pl.pallas_call(
        kern,
        out_shape=out_shape,
        grid=(B, H, nq),
        in_specs=in_specs,
        out_specs=out_specs,
        compiler_params=pltpu.CompilerParams(
            dimension_semantics=("parallel", "parallel", "arbitrary"),
            vmem_limit_bytes=vmem_limit),
        cost_estimate=pl.CostEstimate(flops=flops,
                                      transcendentals=B * H * L * L,
                                      bytes_accessed=bytes_accessed),
    )(*args)


# --------------------------------- forward ---------------------------------

def attention_forward(params, x, mask=None, bias=None, *, num_heads, head_width):
    B, L, E = x.shape
    H, Dh = num_heads, head_width
    scale = Dh ** -0.5

    # self.proj (Linear, bias=False) — no zero bias materialized.
    qkv = linear_pallas(x.reshape(B * L, E), params['w_proj_t'], None)
    # rearrange '... l (h c) -> ... h l c', h=num_heads, then chunk(3, dim=-1)
    t = qkv.reshape(B, L, H, 3 * Dh).transpose(0, 2, 1, 3)   # (B, H, L, 3Dh)
    q = t[..., :Dh]
    k = t[..., Dh:2 * Dh]
    v = t[..., 2 * Dh:]

    mask_add = None
    if mask is not None:
        m = mask.astype(jnp.float32).reshape(B, 1, L)
        mask_add = (1.0 - m) * jnp.float32(-1e30)            # additive key mask
    bias_t = None
    if bias is not None:
        bias_t = jnp.transpose(bias, (0, 3, 1, 2)).astype(jnp.float32)  # (B,H,Lq,Lk)

    y_hqc, a = attention_core(q, k, v, bias_t, mask_add, scale)

    # einsum '...hqk,...hkc->...qhc' then merge heads '(h c)'
    y = jnp.transpose(y_hqc, (0, 2, 1, 3)).reshape(B, L, E)
    # self.o_proj (Linear, bias)
    out = linear_pallas(y.reshape(B * L, E), params['w_o_t'],
                        params['b_o']).reshape(B, L, E)

    # rearrange(a, '... lq lk h -> ... h lq lk') applied to (B,H,Lq,Lk)
    # -> (B, Lk, H, Lq); reproduced exactly as in the PyTorch code.
    attn = jnp.transpose(a, (0, 3, 1, 2))
    return out, attn


# --------------------------- pure-JAX reference -----------------------------

def reference_forward(params, x, mask, bias, num_heads, head_width):
    B, L, E = x.shape
    H, Dh = num_heads, head_width
    hp = jax.lax.Precision.HIGHEST
    t = jnp.einsum('ble,ef->blf', x, params['w_proj_t'], precision=hp)
    t = t.reshape(B, L, H, 3 * Dh).transpose(0, 2, 1, 3)
    q = t[..., :Dh] * (Dh ** -0.5)
    k = t[..., Dh:2 * Dh]
    v = t[..., 2 * Dh:]
    a = jnp.einsum('bhqc,bhkc->bhqk', q, k, precision=hp)
    if bias is not None:
        a = a + jnp.transpose(bias, (0, 3, 1, 2))
    if mask is not None:
        a = jnp.where(mask[:, None, None, :], a, -jnp.inf)
    a = jax.nn.softmax(a, axis=-1)
    y = jnp.einsum('bhqk,bhkc->bqhc', a, v, precision=hp).reshape(B, L, E)
    out = jnp.einsum('ble,ef->blf', y, params['w_o_t'], precision=hp) + params['b_o']
    return out, jnp.transpose(a, (0, 3, 1, 2))


# ----------------------------------- main -----------------------------------

if __name__ == "__main__":
    B, L = 2, 8
    NUM_HEADS, HEAD_WIDTH = 4, 8
    E = NUM_HEADS * HEAD_WIDTH  # 32

    key = jax.random.PRNGKey(0)
    k1, k2, k3, k4 = jax.random.split(key, 4)
    params = {
        'w_proj_t': jax.random.normal(k1, (E, 3 * E), jnp.float32) * 0.02,  # proj.weight.T
        'w_o_t':    jax.random.normal(k2, (E, E), jnp.float32) * 0.02,      # o_proj.weight.T
        'b_o':      jnp.zeros((E,), jnp.float32),                           # zeros_ init
    }
    x = jax.random.normal(k3, (B, L, E), jnp.float32)
    bias = jax.random.normal(k4, (B, L, L, NUM_HEADS), jnp.float32) * 0.1
    lengths = jnp.array([L, L - 2], dtype=jnp.int32)
    mask = jnp.arange(L)[None, :] < lengths[:, None]   # (B, L) bool, 1=valid

    out, attn = attention_forward(params, x, mask=mask, bias=bias,
                                  num_heads=NUM_HEADS, head_width=HEAD_WIDTH)
    out = jax.block_until_ready(out)
    attn = jax.block_until_ready(attn)

    out_ref, attn_ref = reference_forward(params, x, mask, bias, NUM_HEADS, HEAD_WIDTH)
    assert out.shape == (B, L, E)
    assert attn.shape == (B, L, NUM_HEADS, L)
    assert jnp.allclose(out, out_ref, atol=1e-3, rtol=1e-2), "output mismatch"
    assert jnp.allclose(attn, attn_ref, atol=1e-3, rtol=1e-2), "attention map mismatch"
    print("KERNEL_OK")
</pallas_src>

<mosaic_0001>
module attributes {stable_mosaic.version = 11 : i64} {
  func.func @_matmul_kernel(%arg0: i32, %arg1: i32, %arg2: i32, %arg3: memref<16x32xf32, #tpu.memory_space<vmem>>, %arg4: memref<32x96xf32, #tpu.memory_space<vmem>>, %arg5: memref<16x96xf32, #tpu.memory_space<vmem>>, %arg6: memref<16x96xf32, #tpu.memory_space<vmem>>) attributes {dimension_semantics = [#tpu.dimension_semantics<parallel>, #tpu.dimension_semantics<parallel>, #tpu.dimension_semantics<arbitrary>], iteration_bounds = array<i64: 1, 1, 1>, scalar_prefetch = 0 : i64, scratch_operands = 1 : i64, tpu.core_type = #tpu.core_type<tc>, window_params = [{transform_indices = @transform_0, window_bounds = array<i64: 16, 32>}, {transform_indices = @transform_1, window_bounds = array<i64: 32, 96>}, {transform_indices = @transform_2, window_bounds = array<i64: 16, 96>}]} {
    %c0_i32 = arith.constant 0 : i32
    %0 = arith.cmpi eq, %arg2, %c0_i32 : i32
    %1 = arith.extui %0 : i1 to i32
    %c0_i32_0 = arith.constant 0 : i32
    %2 = arith.cmpi ne, %1, %c0_i32_0 : i32
    scf.if %2 {
      %cst_10 = arith.constant 0.000000e+00 : f32
      %12 = vector.broadcast %cst_10 : f32 to vector<16x96xf32>
      %c0_11 = arith.constant 0 : index
      %c0_12 = arith.constant 0 : index
      %13 = vector.load %arg6[%c0_11, %c0_12] : memref<16x96xf32, #tpu.memory_space<vmem>>, vector<16x96xf32>
      tpu.vector_store %arg6[%c0_11, %c0_12], %12 {strides = array<i32>} : memref<16x96xf32, #tpu.memory_space<vmem>>, vector<16x96xf32>,
    } else {
    }
    %c0 = arith.constant 0 : index
    %c0_1 = arith.constant 0 : index
    %3 = vector.load %arg6[%c0, %c0_1] : memref<16x96xf32, #tpu.memory_space<vmem>>, vector<16x96xf32>
    %c0_2 = arith.constant 0 : index
    %c0_3 = arith.constant 0 : index
    %4 = vector.load %arg3[%c0_2, %c0_3] : memref<16x32xf32, #tpu.memory_space<vmem>>, vector<16x32xf32>
    %c0_4 = arith.constant 0 : index
    %c0_5 = arith.constant 0 : index
    %5 = vector.load %arg4[%c0_4, %c0_5] : memref<32x96xf32, #tpu.memory_space<vmem>>, vector<32x96xf32>
    %cst = arith.constant dense<0.000000e+00> : vector<16x96xf32>
    %6 = tpu.matmul %4, %5, %cst {dimension_numbers = #tpu.dot_dimension_numbers<[1], [0], [0], [1], [0, 0, 1, 1], [], []>} : vector<16x32xf32>, vector<32x96xf32>, vector<16x96xf32> -> vector<16x96xf32>
    %7 = arith.addf %3, %6 : vector<16x96xf32>
    %c0_6 = arith.constant 0 : index
    %c0_7 = arith.constant 0 : index
    %8 = vector.load %arg6[%c0_6, %c0_7] : memref<16x96xf32, #tpu.memory_space<vmem>>, vector<16x96xf32>
    tpu.vector_store %arg6[%c0_6, %c0_7], %7 {strides = array<i32>} : memref<16x96xf32, #tpu.memory_space<vmem>>, vector<16x96xf32>,
    %c0_i32_8 = arith.constant 0 : i32
    %9 = arith.cmpi eq, %arg2, %c0_i32_8 : i32
    %10 = arith.extui %9 : i1 to i32
    %c0_i32_9 = arith.constant 0 : i32
    %11 = arith.cmpi ne, %10, %c0_i32_9 : i32
    scf.if %11 {
      %c0_10 = arith.constant 0 : index
      %c0_11 = arith.constant 0 : index
      %12 = vector.load %arg6[%c0_10, %c0_11] : memref<16x96xf32, #tpu.memory_space<vmem>>, vector<16x96xf32>
      %c0_12 = arith.constant 0 : index
      %c0_13 = arith.constant 0 : index
      %13 = vector.load %arg5[%c0_12, %c0_13] : memref<16x96xf32, #tpu.memory_space<vmem>>, vector<16x96xf32>
      tpu.vector_store %arg5[%c0_12, %c0_13], %12 {strides = array<i32>} : memref<16x96xf32, #tpu.memory_space<vmem>>, vector<16x96xf32>,
    } else {
    }
    return
  }
  func.func @transform_0(%arg0: i32, %arg1: i32, %arg2: i32) -> (i32, i32) {
    %c0_i32 = arith.constant 0 : i32
    return %arg0, %arg2 : i32, i32
  }
  func.func @transform_1(%arg0: i32, %arg1: i32, %arg2: i32) -> (i32, i32) {
    %c0_i32 = arith.constant 0 : i32
    return %arg2, %arg1 : i32, i32
  }
  func.func @transform_2(%arg0: i32, %arg1: i32, %arg2: i32) -> (i32, i32) {
    %c0_i32 = arith.constant 0 : i32
    return %arg0, %arg1 : i32, i32
  }
}

</mosaic_0001>

<llo_original>
// kernel: tpu_custom_call.1
$region0: #{tpu_custom_call.1}
  #allocation0 [shape = 'u32[]', space=smem, size = 0x4, offset = 0x4, fixed_abs, tag = 'smem constant byte address 0x4 - core index']
  #allocation1 [shape = 'u32[144,128]{1,0:T(1,128)}', space=vmem, size = 0x12000, scoped, tag = 'internal scratch']
  #allocation2 [shape = 'f32[16,96]{1,0:T(8,128)}', space=vmem, size = 0x2000, scoped, tag = 'scratch operand']
  %s0 = inlined_call_operand.hbm [shape: f32[16,32], index: 0, kind: input, shape index: {}]
  %s1 = inlined_call_operand.hbm [shape: f32[32,96], index: 1, kind: input, shape index: {}]
  %s2 = inlined_call_operand.hbm [shape: f32[16,96], index: 2, kind: output, shape index: {}]
  %s3 = sld [smem:[#allocation0]]
  $region34: #{tpu_custom_call.1} parent=0
    _
  %s5 = ssub.s32 1, %s3
  %s6 = scalar_select 0, %s5, %s3
  $region1: #{tpu_custom_call.1} parent=0
    #allocation3 [shape = 'u8[8192]{0}', space=vmem, size = 0x2000, scoped, tag = 'input window, operand 0, single buffered']
    #allocation4 [shape = 's32[1]{0}', space=sflag, size = 0x4, scoped, tag = 'scoped memory for tpu_custom_call.1']
    #allocation5 [shape = 's32[1]{0}', space=sflag, size = 0x4, scoped, tag = 'scoped memory for tpu_custom_call.1']
    #allocation6 [shape = 'u8[16384]{0}', space=vmem, size = 0x4000, scoped, tag = 'input window, operand 1, single buffered']
    #allocation7 [shape = 's32[1]{0}', space=sflag, size = 0x4, scoped, tag = 'scoped memory for tpu_custom_call.1']
    #allocation8 [shape = 'u8[8192]{0}', space=vmem, size = 0x2000, scoped, tag = 'output window, operand 0, single buffered']
    %7 = vsyncpa [#allocation4], 0
    %8 = vsyncpa [#allocation7], 0
    %9 = vsyncpa [#allocation5], 0
    // Predicated region
    $region2: #{tpu_custom_call.1} parent=1 // pred_check
      _
    $region3: #{tpu_custom_call.1} parent=1 // pred_check_branch
      %11 = sbr.rel (0) target = $region5
    $region4: #{tpu_custom_call.1} parent=1 // pred_region
      %s13 = ssub.s32 256, 256
      %14 = vsyncadd [#allocation4], %s13
      %s15 = sshll.u32 [#allocation3], 4
      %s16 = int_to_ptr.vmem [resolvable:$true] %s15
      %21 = dma.hbm_to_vmem [thread:$0]  %s0, 256, %s16, [#allocation4], 128, 128, 8
    $region5: #{tpu_custom_call.1} parent=1 // pred_fallthru
      _
    // Predicated region
    $region6: #{tpu_custom_call.1} parent=1 // pred_check
      _
    $region7: #{tpu_custom_call.1} parent=1 // pred_check_branch
      %23 = sbr.rel (0) target = $region9
    $region8: #{tpu_custom_call.1} parent=1 // pred_region
      %s25 = ssub.s32 512, 512
      %26 = vsyncadd [#allocation7], %s25
      %s27 = sshll.u32 [#allocation6], 4
      %s28 = int_to_ptr.vmem [resolvable:$true] %s27
      %33 = dma.hbm_to_vmem [thread:$0]  %s1, 512, %s28, [#allocation7], 128, 128, 8
    $region9: #{tpu_custom_call.1} parent=1 // pred_fallthru
      _
    // Predicated region
    $region10: #{tpu_custom_call.1} parent=1 // pred_check
      _
    $region11: #{tpu_custom_call.1} parent=1 // pred_check_branch
      %35 = sbr.rel (0) target = $region13
    $region12: #{tpu_custom_call.1} parent=1 // pred_region
      %36 = dma.done [#allocation4], 256
    $region13: #{tpu_custom_call.1} parent=1 // pred_fallthru
      _
    // Predicated region
    $region14: #{tpu_custom_call.1} parent=1 // pred_check
      _
    $region15: #{tpu_custom_call.1} parent=1 // pred_check_branch
      %38 = sbr.rel (0) target = $region17
    $region16: #{tpu_custom_call.1} parent=1 // pred_region
      %39 = dma.done [#allocation7], 512
    $region17: #{tpu_custom_call.1} parent=1 // pred_fallthru
      _
    %p40 = scmp.eq.s32.totalorder 0, 0
    // Predicated region
    $region18: #{tpu_custom_call.1} parent=1 // pred_check
      %p41 = pneg %p40
    $region19: #{tpu_custom_call.1} parent=1 // pred_check_branch
      %43 = sbr.rel (%p41) target = $region21
    $region20: #{tpu_custom_call.1} parent=1 // pred_region
      %vm44 = vcmask 785408
      %45 = vst.msk [vmem:[#allocation2] sm:$0xff] %vm44, 0.0
      %46 = vst.msk [vmem:[#allocation2 + $0x8] sm:$0xff] %vm44, 0.0
    $region21: #{tpu_custom_call.1} parent=1 // pred_fallthru
      _
    %v47 = vld [vmem:[#allocation2] sm:$0xff]
    %v48 = vld [vmem:[#allocation2 + $0x8] sm:$0xff]
    %v49 = vld [vmem:[#allocation3] sm:$0xff]
    %v50 = vld [vmem:[#allocation3 + $0x8] sm:$0xff]
    %v51 = vld [vmem:[#allocation6] sm:$0xff]
    %v52 = vld [vmem:[#allocation6 + $0x8] sm:$0xff]
    %v53 = vld [vmem:[#allocation6 + $0x10] sm:$0xff]
    %v54 = vld [vmem:[#allocation6 + $0x18] sm:$0xff]
    %vm55 = vcmask 261120
    %v57 = vsel %vm55, %v49, 0
    %v60 = vsel %vm55, %v50, 0
    %62 = vmatprep.subr.mxu0 0.0
    %63 = vmatpush1.msra.mxu0 0.0
    %64 = vmatprep.subr.mxu0 0.0
    %65 = vmatpush1.msra.mxu0 0.0
    %66 = vmatprep.subr.mxu0 0.0
    %67 = vmatpush1.msra.mxu0 0.0
    %68 = vmatprep.subr.mxu0 0.0
    %69 = vmatpush1.msra.mxu0 0.0
    %70 = vmatprep.subr.mxu0 0.0
    %71 = vmatpush1.msra.mxu0 0.0
    %72 = vmatprep.subr.mxu0 0.0
    %73 = vmatpush1.msra.mxu0 0.0
    %74 = vmatprep.subr.mxu0 0.0
    %75 = vmatpush1.msra.mxu0 0.0
    %76 = vmatprep.subr.mxu0 0.0
    %77 = vmatpush1.msra.mxu0 0.0
    %78 = vmatprep.subr.mxu0 0.0
    %79 = vmatpush1.msra.mxu0 0.0
    %80 = vmatprep.subr.mxu0 0.0
    %81 = vmatpush1.msra.mxu0 0.0
    %82 = vmatprep.subr.mxu0 0.0
    %83 = vmatpush1.msra.mxu0 0.0
    %84 = vmatprep.subr.mxu0 0.0
    %85 = vmatpush1.msra.mxu0 0.0
    %86 = vmatprep.subr.mxu0 0.0
    %87 = vmatpush1.msra.mxu0 %v54
    %88 = vmatprep.subr.mxu0 0.0
    %89 = vmatpush1.msra.mxu0 %v53
    %90 = vmatprep.subr.mxu0 0.0
    %91 = vmatpush1.msra.mxu0 %v52
    %92 = vmatprep.subr.mxu0 0.0
    %93 = vmatpush1.msra.mxu0 %v51
    %94 = vmatprep.subr.mxu0 0.0
    %95 = vmatpush2.msra.mxu0 0.0
    %96 = vmatprep.subr.mxu0 0.0
    %97 = vmatpush2.msra.mxu0 0.0
    %98 = vmatprep.subr.mxu0 0.0
    %99 = vmatpush2.msra.mxu0 0.0
    %100 = vmatprep.subr.mxu0 0.0
    %101 = vmatpush2.msra.mxu0 0.0
    %102 = vmatprep.subr.mxu0 0.0
    %103 = vmatpush2.msra.mxu0 0.0
    %104 = vmatprep.subr.mxu0 0.0
    %105 = vmatpush2.msra.mxu0 0.0
    %106 = vmatprep.subr.mxu0 0.0
    %107 = vmatpush2.msra.mxu0 0.0
    %108 = vmatprep.subr.mxu0 0.0
    %109 = vmatpush2.msra.mxu0 0.0
    %110 = vmatprep.subr.mxu0 0.0
    %111 = vmatpush2.msra.mxu0 0.0
    %112 = vmatprep.subr.mxu0 0.0
    %113 = vmatpush2.msra.mxu0 0.0
    %114 = vmatprep.subr.mxu0 0.0
    %115 = vmatpush2.msra.mxu0 0.0
    %116 = vmatprep.subr.mxu0 0.0
    %117 = vmatpush2.msra.mxu0 0.0
    %118 = vmatprep.subr.mxu0 0.0
    %119 = vmatpush2.msra.mxu0 0.0
    %120 = vmatprep.subr.mxu0 0.0
    %121 = vmatpush2.msra.mxu0 0.0
    %122 = vmatprep.subr.mxu0 0.0
    %123 = vmatpush2.msra.mxu0 0.0
    %124 = vmatprep.subr.mxu0 0.0
    %125 = vmatpush2.msra.mxu0 0.0
    %126 = vmatprep.mubr.f32.mxu0 0.0
    %127 = vmatmul.mubr.f32.gmra.mxu0 %v57
    %v128 = vpop.f32.mrf.mxu0
    %v129 = vadd.f32 0.0, %v128
    %v130 = vpop.f32.mrf.mxu0
    %131 = vmatprep.mubr.f32.mxu0 0.0
    %132 = vmatmul.mubr.f32.gmra.mxu0 %v60
    %v133 = vpop.f32.mrf.mxu0
    %v134 = vadd.f32 0.0, %v133
    %v135 = vpop.f32.mrf.mxu0
    %136 = vdwg.mxu0
    %v137 = vadd.f32 %v47, %v129
    %v138 = vadd.f32 %v48, %v134
    %vm139 = vcmask 785408
    %140 = vst.msk [vmem:[#allocation2] sm:$0xff] %vm139, %v137
    %141 = vst.msk [vmem:[#allocation2 + $0x8] sm:$0xff] %vm139, %v138
    // Predicated region
    $region22: #{tpu_custom_call.1} parent=1 // pred_check
      %p142 = pneg %p40
    $region23: #{tpu_custom_call.1} parent=1 // pred_check_branch
      %144 = sbr.rel (%p142) target = $region25
    $region24: #{tpu_custom_call.1} parent=1 // pred_region
      %v145 = vld [vmem:[#allocation2] sm:$0xff]
      %v146 = vld [vmem:[#allocation2 + $0x8] sm:$0xff]
      %147 = vst.msk [vmem:[#allocation8] sm:$0xff] %vm139, %v145
      %148 = vst.msk [vmem:[#allocation8 + $0x8] sm:$0xff] %vm139, %v146
    $region25: #{tpu_custom_call.1} parent=1 // pred_fallthru
      _
    // Predicated region
    $region26: #{tpu_custom_call.1} parent=1 // pred_check
      _
    $region27: #{tpu_custom_call.1} parent=1 // pred_check_branch
      %150 = sbr.rel (0) target = $region29
    $region28: #{tpu_custom_call.1} parent=1 // pred_region
      %s152 = ssub.s32 256, 256
      %153 = vsyncadd [#allocation5], %s152
      %s154 = sshll.u32 [#allocation8], 4
      %s155 = int_to_ptr.vmem [resolvable:$true] %s154
      %160 = dma.vmem_to_hbm [thread:$0]  %s155, 256, %s2, [#allocation5], 128, 128, 8
    $region29: #{tpu_custom_call.1} parent=1 // pred_fallthru
      _
    // Predicated region
    $region30: #{tpu_custom_call.1} parent=1 // pred_check
      _
    $region31: #{tpu_custom_call.1} parent=1 // pred_check_branch
      %162 = sbr.rel (0) target = $region33
    $region32: #{tpu_custom_call.1} parent=1 // pred_region
      %163 = dma.done [#allocation5], 256
    $region33: #{tpu_custom_call.1} parent=1 // pred_fallthru
      _
    %164 = vsyncpa [#allocation4], 1
    %165 = vsyncpa [#allocation7], 1
    %166 = vsyncpa [#allocation5], 1

</llo_original>
